<compile_context>
chip_gen: v7x
topology: tpu7x:2x2x1
jax: 0.10.0
libtpu: 0.0.40
codegen_flags: <defaults>
</compile_context>

<pallas_src>
import functools

import jax
import jax.numpy as jnp
from jax.experimental import pallas as pl
from jax.experimental.pallas import tpu as pltpu

LANE = 128
MAX_TILE_R = 512      # rows of 128 lanes per grid step; ~7 MiB double-buffered VMEM
BIG = 1.0e6


def _cdiv(a, b):
    return (a + b - 1) // b


def _round_up(a, b):
    return _cdiv(a, b) * b


# ----------------------------------------------------------------------------
# Dense per-pixel loss kernel: accumulates
#   sum |depth - scale*target_depth|    (L1, later divided by pixel count)
#   sum cross_entropy(seg, labels)      (later divided by pixel count)
#   sum smooth_l1((vf - gt_vf) * mask)  (later divided by mask.sum() + 1e-10)
#   sum mask                            (mask == labels.float(), as in the torch code)
# ----------------------------------------------------------------------------
def _dense_loss_kernel(hw, scale_ref, depth_ref, tdepth_ref, labels_ref,
                       seg_ref, vf_ref, gvf_ref,
                       dsum_ref, cesum_ref, vfsum_ref, msum_ref,
                       acc_d, acc_ce, acc_vf, acc_m):
    tile_r = depth_ref.shape[0]

    @pl.when(pl.program_id(2) == 0)
    def _():
        acc_d[...] = jnp.zeros_like(acc_d)
        acc_ce[...] = jnp.zeros_like(acc_ce)
        acc_vf[...] = jnp.zeros_like(acc_vf)
        acc_m[...] = jnp.zeros_like(acc_m)

    scale = scale_ref[0]

    # ---- depth L1 (zero-padded pixels contribute exactly 0) ----
    ddiff = jnp.abs(depth_ref[...] - tdepth_ref[...] * scale)     # (T, 128)
    acc_d[...] += ddiff

    # ---- segmentation cross-entropy ----
    labels = labels_ref[...].astype(jnp.int32)                    # (T, 128)
    logits = seg_ref[...]                                         # (C, T, 128)
    m = jnp.max(logits, axis=0)                                   # (T, 128)
    lse = m + jnp.log(jnp.sum(jnp.exp(logits - m[None]), axis=0))
    cls_ids = jax.lax.broadcasted_iota(jnp.int32, logits.shape, 0)
    tgt_logit = jnp.sum(jnp.where(cls_ids == labels[None], logits, 0.0), axis=0)
    # Zero-padded pixels (all-zero logits, label 0) would contribute log(C), so
    # mask CE with the true pixel index.  Every other term is already 0 there.
    blk = pl.program_id(1) * pl.num_programs(2) + pl.program_id(2)
    base = blk * (tile_r * LANE)
    pix = (base
           + jax.lax.broadcasted_iota(jnp.int32, (tile_r, LANE), 0) * LANE
           + jax.lax.broadcasted_iota(jnp.int32, (tile_r, LANE), 1))
    ce = jnp.where(pix < hw, lse - tgt_logit, 0.0)
    acc_ce[...] += ce

    # ---- masked smooth-L1 on vector field + mask sum ----
    maskf = labels.astype(jnp.float32)                            # mask == labels.float()
    x = (vf_ref[...] - gvf_ref[...]) * maskf[None]                # (2, T, 128)
    ax = jnp.abs(x)
    sl1 = jnp.where(ax < 1.0, 0.5 * x * x, ax - 0.5)              # torch beta = 1.0
    acc_vf[...] += jnp.sum(sl1, axis=0)
    acc_m[...] += maskf

    # cross-lane reduction + scalar writeback only on the last step of this (b, core)
    @pl.when(pl.program_id(2) == pl.num_programs(2) - 1)
    def _():
        dsum_ref[...] = jnp.sum(acc_d[...], axis=(0, 1), keepdims=True)
        cesum_ref[...] = jnp.sum(acc_ce[...], axis=(0, 1), keepdims=True)
        vfsum_ref[...] = jnp.sum(acc_vf[...], axis=(0, 1), keepdims=True)
        msum_ref[...] = jnp.sum(acc_m[...], axis=(0, 1), keepdims=True)


def dense_loss_sums(depth, target_depth, seg, labels, vf, gt_vf, scale):
    b = depth.shape[0]
    c = seg.shape[1]
    h, w = depth.shape[-2], depth.shape[-1]
    hw = h * w

    rows = _cdiv(hw, LANE)
    # big tiles for HBM roofline; keep multiple of 32 so int8 labels tile natively,
    # and split work across the 2-core megacore axis.
    tile_r = min(MAX_TILE_R, _round_up(max(1, _cdiv(rows, 2)), 32))
    bpc = _cdiv(_cdiv(rows, tile_r), 2)          # row blocks per "core" slice
    r_pad = 2 * bpc * tile_r
    hw_pad = r_pad * LANE

    def prep(x, lead_shape, dtype):
        x = x.astype(dtype).reshape(lead_shape + (hw,))     # free reshape (contiguous)
        if hw_pad != hw:
            x = jnp.pad(x, [(0, 0)] * len(lead_shape) + [(0, hw_pad - hw)])
        return x.reshape(lead_shape + (r_pad, LANE))

    depth_f = prep(depth, (b,), jnp.float32)
    tdepth_f = prep(target_depth, (b,), jnp.float32)
    labels_f = prep(labels, (b,), jnp.int8)
    seg_f = prep(seg, (b, c), jnp.float32)
    vf_f = prep(vf, (b, 2), jnp.float32)
    gvf_f = prep(gt_vf, (b, 2), jnp.float32)
    scale_f = scale.astype(jnp.float32).reshape(1)

    grid = (b, 2, bpc)

    def row3():
        return pl.BlockSpec((None, tile_r, LANE),
                            lambda bi, ci, i: (bi, ci * bpc + i, 0))

    def chan4(nc):
        return pl.BlockSpec((None, nc, tile_r, LANE),
                            lambda bi, ci, i: (bi, 0, ci * bpc + i, 0))

    def out_spec():
        return pl.BlockSpec((None, None, 1, 1),
                            lambda bi, ci, i: (bi, ci, 0, 0))

    outs = pl.pallas_call(
        functools.partial(_dense_loss_kernel, hw),
        out_shape=tuple(jax.ShapeDtypeStruct((b, 2, 1, 1), jnp.float32)
                        for _ in range(4)),
        grid=grid,
        in_specs=[
            pl.BlockSpec(memory_space=pltpu.MemorySpace.SMEM),   # scale scalar
            row3(),                                              # depth
            row3(),                                              # target depth
            row3(),                                              # labels (int8)
            chan4(c),                                            # seg logits
            chan4(2),                                            # vector field
            chan4(2),                                            # gt vector field
        ],
        out_specs=tuple(out_spec() for _ in range(4)),
        scratch_shapes=[pltpu.VMEM((tile_r, LANE), jnp.float32) for _ in range(4)],
        compiler_params=pltpu.CompilerParams(
            dimension_semantics=("parallel", "parallel", "arbitrary")),
    )(scale_f, depth_f, tdepth_f, labels_f, seg_f, vf_f, gvf_f)

    dsum, cesum, vfsum, msum = (jnp.sum(o) for o in outs)
    return dsum, cesum, vfsum, msum, b * hw


# ----------------------------------------------------------------------------
# Pose / center loss kernel: mean over predictions of min L2 distance to any
# ground-truth vector.  Both problems (translations, centers) are fused into a
# single pallas_call (grid over problems).  Pairwise distances via
# |p|^2 + |g|^2 - 2 p.g with the feature dim padded only to 8.
# ----------------------------------------------------------------------------
def _pose_loss_kernel(pred_ref, gt_t_ref, valid_ref, out_ref):
    p = pred_ref[...]                                    # (NP_PAD, D_PAD)
    g = gt_t_ref[...]                                    # (D_PAD, NG_PAD)
    p2 = jnp.sum(p * p, axis=1, keepdims=True)           # (NP_PAD, 1)
    g2 = jnp.sum(g * g, axis=0, keepdims=True)           # (1, NG_PAD)
    cross = jnp.dot(p, g, preferred_element_type=jnp.float32)
    d2 = jnp.maximum(p2 + g2 - 2.0 * cross, 0.0)
    d = jnp.sqrt(d2)
    mind = jnp.min(d, axis=1, keepdims=True)             # (NP_PAD, 1)
    out_ref[...] = jnp.sum(mind * valid_ref[...], axis=(0, 1), keepdims=True)


def pose_min_dist_losses(problems):
    """problems: list of (pred (Np,D), gt (Ng,D)). Returns list of mean-min-dist."""
    nprob = len(problems)
    np_pad = _round_up(max(p.shape[0] for p, _ in problems), 8)
    ng_pad = _round_up(max(g.shape[0] for _, g in problems), 8)
    d_pad = _round_up(max(max(p.shape[1], g.shape[1]) for p, g in problems), 8)

    preds, gtts, valids = [], [], []
    for pred, gt in problems:
        n_pred, d = pred.shape
        n_gt, dg = gt.shape
        pp = jnp.zeros((np_pad, d_pad), jnp.float32).at[:n_pred, :d].set(
            pred.astype(jnp.float32))
        gp = jnp.full((ng_pad, d_pad), BIG, jnp.float32)
        gp = gp.at[:n_gt, :].set(0.0).at[:n_gt, :dg].set(gt.astype(jnp.float32))
        vv = (jnp.arange(np_pad) < n_pred).astype(jnp.float32)[:, None]
        preds.append(pp)
        gtts.append(gp.T)        # tiny (<=8x128-ish) host transpose: negligible
        valids.append(vv)

    pred_s = jnp.stack(preds)            # (nprob, NP_PAD, D_PAD)
    gtt_s = jnp.stack(gtts)              # (nprob, D_PAD, NG_PAD)
    valid_s = jnp.stack(valids)          # (nprob, NP_PAD, 1)

    sums = pl.pallas_call(
        _pose_loss_kernel,
        out_shape=jax.ShapeDtypeStruct((nprob, 1, 1), jnp.float32),
        grid=(nprob,),
        in_specs=[
            pl.BlockSpec((None, np_pad, d_pad), lambda j: (j, 0, 0)),
            pl.BlockSpec((None, d_pad, ng_pad), lambda j: (j, 0, 0)),
            pl.BlockSpec((None, np_pad, 1), lambda j: (j, 0, 0)),
        ],
        out_specs=pl.BlockSpec((None, 1, 1), lambda j: (j, 0, 0)),
        compiler_params=pltpu.CompilerParams(dimension_semantics=("arbitrary",)),
    )(pred_s, gtt_s, valid_s)

    return [sums[j, 0, 0] / float(problems[j][0].shape[0]) for j in range(nprob)]


# ----------------------------------------------------------------------------
# MultiTaskLoss forward
# ----------------------------------------------------------------------------
def multi_task_loss(outputs, targets, lambda_pos=1.0, lambda_depth=0.5,
                    lambda_seg=0.5, lambda_vf=0.5):
    vote_map, centers, translations, depth, seg, vector_field, _ = outputs
    del vote_map

    zero = jnp.float32(0.0)
    pos_loss = zero
    center_loss = zero
    depth_loss = zero
    seg_loss = zero
    vf_loss = zero

    # --- pose / center losses (fused into one pallas_call) ---
    pose = targets.get('pose')
    problems = []
    if pose is not None:
        gt_t = pose.get('t')
        gt_c = pose.get('centers')
        if (gt_t is not None and translations is not None
                and translations.shape[0] > 0 and gt_t.shape[0] > 0):
            problems.append(('pos', translations, gt_t))
        if (gt_c is not None and centers is not None
                and centers.shape[0] > 0 and gt_c.shape[0] > 0):
            problems.append(('center', centers, gt_c))
    if problems:
        vals = pose_min_dist_losses([(p, g) for _, p, g in problems])
        for (name, _, _), v in zip(problems, vals):
            if name == 'pos':
                pos_loss = v
            else:
                center_loss = v

    # --- dense pixel losses (single fused kernel) ---
    target_depth = targets.get('depth_map')
    target_seg = targets.get('segmentation_mask')
    gt_vf = targets.get('vector_field')
    # TODO(synk): F.interpolate resize branches (nearest/bilinear) and the fully
    # independent per-target loss branches are not implemented; the fused kernel
    # assumes depth/seg/vf targets are all present and match prediction sizes.
    if target_depth is not None and target_seg is not None and gt_vf is not None:
        if target_depth.ndim == 2:
            target_depth = target_depth[None, None]
        elif target_depth.ndim == 3:
            target_depth = target_depth[:, None]
        target_depth = target_depth.astype(jnp.float32)
        if target_seg.ndim == 4 and target_seg.shape[1] == 1:
            target_seg = target_seg[:, 0]
        if gt_vf.ndim == 4 and gt_vf.shape[1] != 2 and gt_vf.shape[-1] == 2:
            gt_vf = jnp.transpose(gt_vf, (0, 3, 1, 2))

        # data-dependent /255 normalization branch -> scalar fused into the kernel
        scale_cond = (jnp.max(target_depth) > 10.0) & (jnp.max(depth) < 10.0)
        scale = jnp.where(scale_cond, jnp.float32(1.0 / 255.0), jnp.float32(1.0))

        dsum, cesum, vfsum, msum, pcount = dense_loss_sums(
            depth, target_depth, seg, target_seg, vector_field, gt_vf, scale)
        depth_loss = dsum / float(pcount)
        seg_loss = cesum / float(pcount)
        vf_loss = vfsum / (msum + 1e-10)

    total_loss = (lambda_pos * pos_loss + lambda_depth * depth_loss
                  + lambda_seg * seg_loss + lambda_vf * vf_loss
                  + 0.5 * center_loss)
    loss_dict = {'pos': pos_loss, 'depth': depth_loss, 'seg': seg_loss,
                 'vf': vf_loss, 'center': center_loss, 'total': total_loss}
    return total_loss, loss_dict


if __name__ == "__main__":
    key = jax.random.PRNGKey(0)
    ks = jax.random.split(key, 10)

    B, C_SEG, H, W = 2, 4, 16, 16
    depth = jax.random.uniform(ks[0], (B, 1, H, W), jnp.float32)          # NCHW
    target_depth = jax.random.uniform(ks[1], (B, 1, H, W), jnp.float32)
    seg = jax.random.normal(ks[2], (B, C_SEG, H, W), jnp.float32)         # logits
    target_seg = jax.random.randint(ks[3], (B, H, W), 0, C_SEG)           # labels
    vector_field = jax.random.normal(ks[4], (B, 2, H, W), jnp.float32)
    gt_vector_field = jax.random.normal(ks[5], (B, 2, H, W), jnp.float32)
    translations = jax.random.normal(ks[6], (3, 3), jnp.float32)          # (Np, 3)
    gt_translations = jax.random.normal(ks[7], (2, 3), jnp.float32)       # (Ng, 3)
    centers = jax.random.uniform(ks[8], (3, 2), jnp.float32) * 16.0       # (Np, 2)
    gt_centers = jax.random.uniform(ks[9], (2, 2), jnp.float32) * 16.0    # (Ng, 2)

    vote_map = jnp.zeros((B, 1, H, W), jnp.float32)
    fused_features = jnp.zeros((B, 8, H, W), jnp.float32)

    outputs = (vote_map, centers, translations, depth, seg, vector_field,
               fused_features)
    targets = {
        'depth_map': target_depth,
        'segmentation_mask': target_seg,
        'vector_field': gt_vector_field,
        'pose': {'t': gt_translations, 'centers': gt_centers},
    }

    total_loss, loss_dict = multi_task_loss(outputs, targets)
    total_loss = jax.block_until_ready(total_loss)
    jax.block_until_ready(loss_dict)
    print("KERNEL_OK")
</pallas_src>

<mosaic_0001>
module attributes {stable_mosaic.version = 11 : i64} {
  func.func @_pose_loss_kernel(%arg0: i32, %arg1: memref<1x8x8xf32, #tpu.memory_space<vmem>>, %arg2: memref<1x8x8xf32, #tpu.memory_space<vmem>>, %arg3: memref<1x8x1xf32, #tpu.memory_space<vmem>>, %arg4: memref<1x1x1xf32, #tpu.memory_space<vmem>>) attributes {dimension_semantics = [#tpu.dimension_semantics<arbitrary>], iteration_bounds = array<i64: 2>, scalar_prefetch = 0 : i64, scratch_operands = 0 : i64, tpu.core_type = #tpu.core_type<tc>, window_params = [{transform_indices = @transform_0, window_bounds = array<i64: 1, 8, 8>}, {transform_indices = @transform_1, window_bounds = array<i64: 1, 8, 8>}, {transform_indices = @transform_2, window_bounds = array<i64: 1, 8, 1>}, {transform_indices = @transform_3, window_bounds = array<i64: 1, 1, 1>}]} {
    %c0 = arith.constant 0 : index
    %c0_0 = arith.constant 0 : index
    %c0_1 = arith.constant 0 : index
    %0 = vector.load %arg1[%c0, %c0_0, %c0_1] : memref<1x8x8xf32, #tpu.memory_space<vmem>>, vector<1x8x8xf32>
    %1 = vector.shape_cast %0 : vector<1x8x8xf32> to vector<8x8xf32>
    %c0_2 = arith.constant 0 : index
    %c0_3 = arith.constant 0 : index
    %c0_4 = arith.constant 0 : index
    %2 = vector.load %arg2[%c0_2, %c0_3, %c0_4] : memref<1x8x8xf32, #tpu.memory_space<vmem>>, vector<1x8x8xf32>
    %3 = vector.shape_cast %2 : vector<1x8x8xf32> to vector<8x8xf32>
    %4 = arith.mulf %1, %1 : vector<8x8xf32>
    %cst = arith.constant dense<0.000000e+00> : vector<8xf32>
    %5 = vector.multi_reduction <add>, %4, %cst [1] : vector<8x8xf32> to vector<8xf32>
    %6 = vector.shape_cast %5 : vector<8xf32> to vector<8x1xf32>
    %7 = arith.mulf %3, %3 : vector<8x8xf32>
    %cst_5 = arith.constant dense<0.000000e+00> : vector<8xf32>
    %8 = vector.multi_reduction <add>, %7, %cst_5 [0] : vector<8x8xf32> to vector<8xf32>
    %9 = vector.shape_cast %8 : vector<8xf32> to vector<1x8xf32>
    %cst_6 = arith.constant dense<0.000000e+00> : vector<8x8xf32>
    %10 = tpu.matmul %1, %3, %cst_6 {dimension_numbers = #tpu.dot_dimension_numbers<[1], [0], [0], [1], [0, 0, 1, 1], [], []>} : vector<8x8xf32>, vector<8x8xf32>, vector<8x8xf32> -> vector<8x8xf32>
    %11 = vector.broadcast %6 : vector<8x1xf32> to vector<8x8xf32>
    %12 = vector.broadcast %9 : vector<1x8xf32> to vector<8x8xf32>
    %13 = arith.addf %11, %12 : vector<8x8xf32>
    %cst_7 = arith.constant 2.000000e+00 : f32
    %14 = vector.broadcast %cst_7 : f32 to vector<8x8xf32>
    %15 = arith.mulf %14, %10 : vector<8x8xf32>
    %16 = arith.subf %13, %15 : vector<8x8xf32>
    %cst_8 = arith.constant 0.000000e+00 : f32
    %17 = vector.broadcast %cst_8 : f32 to vector<8x8xf32>
    %18 = arith.maximumf %16, %17 : vector<8x8xf32>
    %19 = math.sqrt %18 : vector<8x8xf32>
    %cst_9 = arith.constant dense<0x7F800000> : vector<8xf32>
    %20 = vector.multi_reduction <minimumf>, %19, %cst_9 [1] : vector<8x8xf32> to vector<8xf32>
    %21 = vector.shape_cast %20 : vector<8xf32> to vector<8x1xf32>
    %c0_10 = arith.constant 0 : index
    %c0_11 = arith.constant 0 : index
    %c0_12 = arith.constant 0 : index
    %22 = vector.load %arg3[%c0_10, %c0_11, %c0_12] : memref<1x8x1xf32, #tpu.memory_space<vmem>>, vector<1x8x1xf32>
    %23 = vector.shape_cast %22 : vector<1x8x1xf32> to vector<8x1xf32>
    %24 = arith.mulf %21, %23 : vector<8x1xf32>
    %25 = vector.shape_cast %24 : vector<8x1xf32> to vector<1x8x1xf32>
    %cst_13 = arith.constant dense<0.000000e+00> : vector<1xf32>
    %26 = vector.multi_reduction <add>, %25, %cst_13 [1, 2] : vector<1x8x1xf32> to vector<1xf32>
    %27 = vector.shape_cast %26 : vector<1xf32> to vector<1x1x1xf32>
    %28 = vector.extract %27[0, 0, 0] : f32 from vector<1x1x1xf32>
    %29 = vector.broadcast %28 : f32 to vector<1x1xf32>
    %c0_14 = arith.constant 0 : index
    %c0_15 = arith.constant 0 : index
    %c0_16 = arith.constant 0 : index
    %30 = vector.load %arg4[%c0_14, %c0_15, %c0_16] : memref<1x1x1xf32, #tpu.memory_space<vmem>>, vector<1x1x1xf32>
    %31 = vector.shape_cast %30 : vector<1x1x1xf32> to vector<1x1xf32>
    %32 = vector.shape_cast %29 : vector<1x1xf32> to vector<1x1x1xf32>
    tpu.vector_store %arg4[%c0_14, %c0_15, %c0_16], %32 {strides = array<i32>} : memref<1x1x1xf32, #tpu.memory_space<vmem>>, vector<1x1x1xf32>,
    return
  }
  func.func @transform_0(%arg0: i32) -> (i32, i32, i32) {
    %c0_i32 = arith.constant 0 : i32
    %c0_i32_0 = arith.constant 0 : i32
    %c0_i32_1 = arith.constant 0 : i32
    return %arg0, %c0_i32, %c0_i32_0 : i32, i32, i32
  }
  func.func @transform_1(%arg0: i32) -> (i32, i32, i32) {
    %c0_i32 = arith.constant 0 : i32
    %c0_i32_0 = arith.constant 0 : i32
    %c0_i32_1 = arith.constant 0 : i32
    return %arg0, %c0_i32, %c0_i32_0 : i32, i32, i32
  }
  func.func @transform_2(%arg0: i32) -> (i32, i32, i32) {
    %c0_i32 = arith.constant 0 : i32
    %c0_i32_0 = arith.constant 0 : i32
    %c0_i32_1 = arith.constant 0 : i32
    return %arg0, %c0_i32, %c0_i32_0 : i32, i32, i32
  }
  func.func @transform_3(%arg0: i32) -> (i32, i32, i32) {
    %c0_i32 = arith.constant 0 : i32
    %c0_i32_0 = arith.constant 0 : i32
    %c0_i32_1 = arith.constant 0 : i32
    return %arg0, %c0_i32, %c0_i32_0 : i32, i32, i32
  }
}

</mosaic_0001>

<llo_original>
// kernel: tpu_custom_call.1
$region0: #{tpu_custom_call.1}
  #allocation0 [shape = 'u32[]', space=smem, size = 0x4, offset = 0x4, fixed_abs, tag = 'smem constant byte address 0x4 - core index']
  #allocation1 [shape = 'u32[144,128]{1,0:T(1,128)}', space=vmem, size = 0x12000, scoped, tag = 'internal scratch']
  %s0 = inlined_call_operand.vmem [shape: f32[2,8,8], index: 0, kind: input, shape index: {}]
  %s1 = inlined_call_operand.hbm [shape: f32[2,8,8], index: 1, kind: input, shape index: {}]
  %s2 = inlined_call_operand.vmem [shape: f32[2,8,1], index: 2, kind: input, shape index: {}]
  %s3 = inlined_call_operand.vmem [shape: f32[2,1,1], index: 3, kind: output, shape index: {}]
  %s4 = sld [smem:[#allocation0]]
  $region49: #{tpu_custom_call.1} parent=0
    _
  %s6 = ssub.s32 1, %s4
  %s7 = scalar_select 0, %s6, %s4
  $region1: #{tpu_custom_call.1} parent=0
    #allocation2 [shape = 'u8[8192]{0}', space=vmem, size = 0x2000, scoped, tag = 'input window, operand 1']
    #allocation3 [shape = 's32[2]{0}', space=sflag, size = 0x8, scoped, tag = 'scoped memory for tpu_custom_call.1']
    %8 = vsyncpa [#allocation3], 0
    %s9 = scalar_lea.sflag [#allocation3], 1
    %10 = vsyncpa %s9, 0
    loop: start=0, step=1, limit=4
    $region2: #{tpu_custom_call.1} parent=1 // loop_pre_header
      _
    $region3: #{tpu_custom_call.1} parent=1 // loop_header
      %s12 = sphi 0, %s16
      %p13 = scmp.ge.s32.totalorder %s12, 4
      %s22 = sphi 0, %s24
      %s25 = sphi 0, %s22
      %s26 = sphi 0, %s25
      %s42 = sphi 0, %s26
      %s48 = sphi 0, %s50
      %s51 = sphi 0, %s48
      %s52 = sphi 0, %s51
      %s68 = sphi 0, %s52
      %s74 = sphi 0, %s76
      %s77 = sphi 0, %s74
      %s78 = sphi 0, %s77
      %s94 = sphi 0, %s78
      %s100 = sphi 0, %s102
      %s103 = sphi 0, %s100
      %s104 = sphi 0, %s103
      %s120 = sphi 0, %s104
    $region4: #{tpu_custom_call.1} parent=1 // loop_header_branch
      %15 = sbr.rel (%p13) target = $region8
    $region5: #{tpu_custom_call.1} parent=1 // loop_body
      %s17 = ssub.s32 %s12, 1
      %s18 = ssub.s32 %s12, 2
      %s19 = sadd.s32 %s12, 1
      %s20 = ssub.s32 %s12, %s19
      %p21 = scmp.eq.s32.totalorder %s20, 0
      %s23 = sadd.s32 %s22, 1
      %s24 = scalar_select %p21, %s22, %s23
      %p27 = pneg %p21
      %p28 = scmp.eq.s32.totalorder %s12, 1
      %p29 = por %p27, %p28
      %p30 = scmp.ne.s32.totalorder %s22, %s25
      %p31 = scmp.eq.s32.totalorder %s12, 0
      %p32 = por %p30, %p31
      %p33 = scmp.ne.s32.totalorder %s22, %s25
      %p34 = scmp.eq.s32.totalorder %s17, 1
      %p35 = por %p33, %p34
      %p36 = scmp.ne.s32.totalorder %s25, %s26
      %p37 = scmp.eq.s32.totalorder %s17, 0
      %p38 = por %p36, %p37
      %p39 = scmp.ne.s32.totalorder %s25, %s26
      %p40 = scmp.eq.s32.totalorder %s18, 1
      %p41 = por %p39, %p40
      %p43 = scmp.ne.s32.totalorder %s26, %s42
      %p44 = scmp.eq.s32.totalorder %s18, 0
      %p45 = por %p43, %p44
      %s46 = ssub.s32 %s12, %s19
      %p47 = scmp.eq.s32.totalorder %s46, 0
      %s49 = sadd.s32 %s48, 1
      %s50 = scalar_select %p47, %s48, %s49
      %p53 = pneg %p47
      %p54 = scmp.eq.s32.totalorder %s12, 1
      %p55 = por %p53, %p54
      %p56 = scmp.ne.s32.totalorder %s48, %s51
      %p57 = scmp.eq.s32.totalorder %s12, 0
      %p58 = por %p56, %p57
      %p59 = scmp.ne.s32.totalorder %s48, %s51
      %p60 = scmp.eq.s32.totalorder %s17, 1
      %p61 = por %p59, %p60
      %p62 = scmp.ne.s32.totalorder %s51, %s52
      %p63 = scmp.eq.s32.totalorder %s17, 0
      %p64 = por %p62, %p63
      %p65 = scmp.ne.s32.totalorder %s51, %s52
      %p66 = scmp.eq.s32.totalorder %s18, 1
      %p67 = por %p65, %p66
      %p69 = scmp.ne.s32.totalorder %s52, %s68
      %p70 = scmp.eq.s32.totalorder %s18, 0
      %p71 = por %p69, %p70
      %s72 = ssub.s32 %s12, %s19
      %p73 = scmp.eq.s32.totalorder %s72, 0
      %s75 = sadd.s32 %s74, 1
      %s76 = scalar_select %p73, %s74, %s75
      %p79 = pneg %p73
      %p80 = scmp.eq.s32.totalorder %s12, 1
      %p81 = por %p79, %p80
      %p82 = scmp.ne.s32.totalorder %s74, %s77
      %p83 = scmp.eq.s32.totalorder %s12, 0
      %p84 = por %p82, %p83
      %p85 = scmp.ne.s32.totalorder %s74, %s77
      %p86 = scmp.eq.s32.totalorder %s17, 1
      %p87 = por %p85, %p86
      %p88 = scmp.ne.s32.totalorder %s77, %s78
      %p89 = scmp.eq.s32.totalorder %s17, 0
      %p90 = por %p88, %p89
      %p91 = scmp.ne.s32.totalorder %s77, %s78
      %p92 = scmp.eq.s32.totalorder %s18, 1
      %p93 = por %p91, %p92
      %p95 = scmp.ne.s32.totalorder %s78, %s94
      %p96 = scmp.eq.s32.totalorder %s18, 0
      %p97 = por %p95, %p96
      %s98 = ssub.s32 %s12, %s19
      %p99 = scmp.eq.s32.totalorder %s98, 0
      %s101 = sadd.s32 %s100, 1
      %s102 = scalar_select %p99, %s100, %s101
      %p105 = pneg %p99
      %p106 = scmp.eq.s32.totalorder %s12, 1
      %p107 = por %p105, %p106
      %p108 = scmp.ne.s32.totalorder %s100, %s103
      %p109 = scmp.eq.s32.totalorder %s12, 0
      %p110 = por %p108, %p109
      %p111 = scmp.ne.s32.totalorder %s100, %s103
      %p112 = scmp.eq.s32.totalorder %s17, 1
      %p113 = por %p111, %p112
      %p114 = scmp.ne.s32.totalorder %s103, %s104
      %p115 = scmp.eq.s32.totalorder %s17, 0
      %p116 = por %p114, %p115
      %p117 = scmp.ne.s32.totalorder %s103, %s104
      %p118 = scmp.eq.s32.totalorder %s18, 1
      %p119 = por %p117, %p118
      %p121 = scmp.ne.s32.totalorder %s104, %s120
      %p122 = scmp.eq.s32.totalorder %s18, 0
      %p123 = por %p121, %p122
      %p124 = scmp.le.s32.totalorder 1, %s12
      %p125 = scmp.lt.s32.totalorder %s12, 3
      %p126 = pnand %p124, %p125
      %p127 = pneg %p126
      // Predicated region
      $region9: #{tpu_custom_call.1} parent=5 // pred_check
        _
      $region10: #{tpu_custom_call.1} parent=5 // pred_check_branch
        %129 = sbr.rel (%p126) target = $region12
      $region11: #{tpu_custom_call.1} parent=5 // pred_region
        %s130 = ssub.s32 %s12, 1
      $region12: #{tpu_custom_call.1} parent=5 // pred_fallthru
        _
      %p131 = scmp.lt.s32.totalorder %s12, 2
      // Predicated region
      $region13: #{tpu_custom_call.1} parent=5 // pred_check
        %p132 = pneg %p131
      $region14: #{tpu_custom_call.1} parent=5 // pred_check_branch
        %134 = sbr.rel (%p132) target = $region16
      $region15: #{tpu_custom_call.1} parent=5 // pred_region
        // Predicated region
        $region17: #{tpu_custom_call.1} parent=15 // pred_check
          %p135 = pneg %p32
        $region18: #{tpu_custom_call.1} parent=15 // pred_check_branch
          %137 = sbr.rel (%p135) target = $region20
        $region19: #{tpu_custom_call.1} parent=15 // pred_region
          %p138 = scmp.lt.s32.totalorder %s12, 1
          %s139 = scalar_select %p138, %s12, 1
          %s140 = smul.addr %s139, 8
          %s141 = scalar_lea.vmem %s0, %s140
        $region20: #{tpu_custom_call.1} parent=15 // pred_fallthru
          _
        // Predicated region
        $region21: #{tpu_custom_call.1} parent=15 // pred_check
          %p142 = pneg %p58
        $region22: #{tpu_custom_call.1} parent=15 // pred_check_branch
          %144 = sbr.rel (%p142) target = $region24
        $region23: #{tpu_custom_call.1} parent=15 // pred_region
          %s145 = sand.u32 %s48, 1
          %s146 = scalar_lea.sflag [#allocation3], %s145
          %s147 = sand.u32 %s48, 1
          %s148 = smul.addr %s147, 8
          %s149 = scalar_lea.vmem [#allocation2], %s148
          %s151 = ssub.s32 128, 128
          %152 = vsyncadd %s146, %s151
          %s153 = smul.addr %s12, 128
          %s154 = scalar_lea.hbm %s1, %s153
          %s156 = sshll.u32 %s149, 4
          %s157 = int_to_ptr.vmem [resolvable:$true] %s156
          %159 = dma.hbm_to_vmem [thread:$0]  %s154, 128, %s157, %s146
        $region24: #{tpu_custom_call.1} parent=15 // pred_fallthru
          _
        // Predicated region
        $region25: #{tpu_custom_call.1} parent=15 // pred_check
          %p160 = pneg %p84
        $region26: #{tpu_custom_call.1} parent=15 // pred_check_branch
          %162 = sbr.rel (%p160) target = $region28
        $region27: #{tpu_custom_call.1} parent=15 // pred_region
          %p163 = scmp.lt.s32.totalorder %s12, 1
          %s164 = scalar_select %p163, %s12, 1
          %s165 = smul.addr %s164, 8
          %s166 = scalar_lea.vmem %s2, %s165
        $region28: #{tpu_custom_call.1} parent=15 // pred_fallthru
          _
      $region16: #{tpu_custom_call.1} parent=5 // pred_fallthru
        _
      %p167 = scmp.le.s32.totalorder 1, %s12
      %p168 = scmp.lt.s32.totalorder %s12, 3
      %p169 = pnand %p167, %p168
      %p170 = pneg %p169
      // Predicated region
      $region29: #{tpu_custom_call.1} parent=5 // pred_check
        _
      $region30: #{tpu_custom_call.1} parent=5 // pred_check_branch
        %172 = sbr.rel (%p169) target = $region32
      $region31: #{tpu_custom_call.1} parent=5 // pred_region
        %s173 = ssub.s32 %s12, 1
        %s174 = sand.u32 %s51, 1
        %s175 = scalar_lea.sflag [#allocation3], %s174
        %s176 = sand.u32 %s51, 1
        %s177 = smul.addr %s176, 8
        %s178 = scalar_lea.vmem [#allocation2], %s177
        // Predicated region
        $region33: #{tpu_custom_call.1} parent=31 // pred_check
          %p179 = pneg %p64
        $region34: #{tpu_custom_call.1} parent=31 // pred_check_branch
          %181 = sbr.rel (%p179) target = $region36
        $region35: #{tpu_custom_call.1} parent=31 // pred_region
          %182 = dma.done %s175, 128
        $region36: #{tpu_custom_call.1} parent=31 // pred_fallthru
          _
        %p183 = scmp.lt.s32.totalorder %s17, 1
        %s184 = scalar_select %p183, %s17, 1
        %s185 = smul.addr %s184, 8
        %s186 = scalar_lea.vmem %s0, %s185
        %p187 = pneg %p38
        %p188 = pneg %p35
        %s189 = sand.u32 %s51, 1
        %s190 = scalar_lea.sflag [#allocation3], %s189
        %s191 = sand.u32 %s51, 1
        %s192 = smul.addr %s191, 8
        %s193 = scalar_lea.vmem [#allocation2], %s192
        %p194 = pneg %p64
        %p195 = pneg %p61
        %p196 = scmp.lt.s32.totalorder %s17, 1
        %s197 = scalar_select %p196, %s17, 1
        %s198 = smul.addr %s197, 8
        %s199 = scalar_lea.vmem %s2, %s198
        %p200 = pneg %p90
        %p201 = pneg %p87
        %p202 = pneg %p116
        %p203 = pneg %p113
        %p204 = scmp.lt.s32.totalorder %s17, 1
        %s205 = scalar_select %p204, %s17, 1
        %s206 = scalar_lea.vmem %s3, %s205
        %p207 = scmp.lt.s32.totalorder %s17, 1
        %s208 = scalar_select %p207, %s17, 1
        %s209 = smul.addr %s208, 8
        %s210 = scalar_lea.vmem %s0, %s209
        %p211 = scmp.lt.s32.totalorder %s17, 1
        %s212 = scalar_select %p211, %s17, 1
        %s213 = smul.addr %s212, 8
        %s214 = scalar_lea.vmem %s2, %s213
        %p215 = scmp.lt.s32.totalorder %s17, 1
        %s216 = scalar_select %p215, %s17, 1
        %s217 = scalar_lea.vmem %s3, %s216
        %v218 = vld [vmem:[%s210] sm:$0xff]
        %v219 = vld [vmem:[%s178] sm:$0xff]
        %v220 = vmul.f32 %v218, %v218
        %vm221 = vcmask 64512
        %v222 = vsel %vm221, %v220, 0.0
        %223 = vadd.xlane.f32.xlu0 %v222
        %v224 = vpop.xlane.xlu0 %223
        %v225 = vmul.f32 %v219, %v219
        %v226 = vsel %vm221, %v225, 0.0
        %v227 = vrot.slane %v226, 4
        %v228 = vadd.f32 %v226, %v227
        %v229 = vrot.slane %v228, 2
        %v230 = vadd.f32 %v228, %v229
        %v231 = vrot.slane %v230, 1
        %v232 = vadd.f32 %v230, %v231
        %v234 = vsel %vm221, %v218, 0
        %236 = vmatprep.subr.mxu0 0.0
        %237 = vmatpush1.msra.mxu0 %v219
        %238 = vmatprep.subr.mxu0 0.0
        %239 = vmatpush1.msra.mxu0 0.0
        %240 = vmatprep.subr.mxu0 0.0
        %241 = vmatpush1.msra.mxu0 0.0
        %242 = vmatprep.subr.mxu0 0.0
        %243 = vmatpush1.msra.mxu0 0.0
        %244 = vmatprep.subr.mxu0 0.0
        %245 = vmatpush1.msra.mxu0 0.0
        %246 = vmatprep.subr.mxu0 0.0
        %247 = vmatpush1.msra.mxu0 0.0
        %248 = vmatprep.subr.mxu0 0.0
        %249 = vmatpush1.msra.mxu0 0.0
        %250 = vmatprep.subr.mxu0 0.0
        %251 = vmatpush1.msra.mxu0 0.0
        %252 = vmatprep.subr.mxu0 0.0
        %253 = vmatpush1.msra.mxu0 0.0
        %254 = vmatprep.subr.mxu0 0.0
        %255 = vmatpush1.msra.mxu0 0.0
        %256 = vmatprep.subr.mxu0 0.0
        %257 = vmatpush1.msra.mxu0 0.0
        %258 = vmatprep.subr.mxu0 0.0
        %259 = vmatpush1.msra.mxu0 0.0
        %260 = vmatprep.subr.mxu0 0.0
        %261 = vmatpush1.msra.mxu0 0.0
        %262 = vmatprep.subr.mxu0 0.0
        %263 = vmatpush1.msra.mxu0 0.0
        %264 = vmatprep.subr.mxu0 0.0
        %265 = vmatpush1.msra.mxu0 0.0
        %266 = vmatprep.subr.mxu0 0.0
        %267 = vmatpush1.msra.mxu0 0.0
        %268 = vmatprep.subr.mxu0 0.0
        %269 = vmatpush1.msra.mxu0 0.0
        %270 = vmatprep.subr.mxu0 0.0
        %271 = vmatpush1.msra.mxu0 0.0
        %272 = vmatprep.subr.mxu0 0.0
        %273 = vmatpush1.msra.mxu0 0.0
        %274 = vmatprep.subr.mxu0 0.0
        %275 = vmatpush1.msra.mxu0 0.0
        %276 = vmatprep.subr.mxu0 0.0
        %277 = vmatpush1.msra.mxu0 0.0
        %278 = vmatprep.subr.mxu0 0.0
        %279 = vmatpush1.msra.mxu0 0.0
        %280 = vmatprep.subr.mxu0 0.0
        %281 = vmatpush1.msra.mxu0 0.0
        %282 = vmatprep.subr.mxu0 0.0
        %283 = vmatpush1.msra.mxu0 0.0
        %284 = vmatprep.subr.mxu0 0.0
        %285 = vmatpush1.msra.mxu0 0.0
        %286 = vmatprep.subr.mxu0 0.0
        %287 = vmatpush1.msra.mxu0 0.0
        %288 = vmatprep.subr.mxu0 0.0
        %289 = vmatpush1.msra.mxu0 0.0
        %290 = vmatprep.subr.mxu0 0.0
        %291 = vmatpush1.msra.mxu0 0.0
        %292 = vmatprep.subr.mxu0 0.0
        %293 = vmatpush1.msra.mxu0 0.0
        %294 = vmatprep.subr.mxu0 0.0
        %295 = vmatpush1.msra.mxu0 0.0
        %296 = vmatprep.subr.mxu0 0.0
        %297 = vmatpush1.msra.mxu0 0.0
        %298 = vmatprep.subr.mxu0 0.0
        %299 = vmatpush1.msra.mxu0 0.0
        %300 = vmatprep.mubr.f32.mxu0 0.0
        %301 = vmatmul.mubr.f32.gmra.mrb[0].mxu0 %v234
        %v302 = vpop.f32.mrb[0].mxu0
        %v303 = vadd.f32 0.0, %v302
        %v304 = vpop.f32.mrb[0].mxu0
        %305 = vdwg.mxu0
        %v306 = vadd.f32 %v224, %v232
        %v307 = vmul.f32 %v303, 2.0
        %v308 = vsub.f32 %v306, %v307
        %v309 = vmax.f32 %v308, 0.0
        %v310 = vrsqrt.pop %v309
        %v311 = vmul.f32 %v309, %v310
        %vm312 = vcmp.eq.f32.partialorder %v309, inf
        %v313 = vsel %vm312, %v309, %v311
        %vm314 = vcmp.eq.f32.partialorder %v309, 0.0
        %v315 = vand.u32 %v309, 2147483648
        %v316 = vsel %vm314, %v315, %v313
        %v317 = vsel %vm221, %v316, inf
        %318 = vmin.xlane.f32.xlu0 %v317
        %v319 = vpop.xlane.xlu0 %318
        %v320 = vld [vmem:[%s214] sm:$0xff]
        %v321 = vmul.f32 %v319, %v320
        %vm322 = vcmask 7168
        %v323 = vsel %vm322, %v321, 0.0
        %324 = vadd.xlane.f32.xlu0 %v323
        %v325 = vpop.xlane.xlu0 %324
        %v326 = vrot.slane %v325, 4
        %v327 = vadd.f32 %v325, %v326
        %v328 = vrot.slane %v327, 2
        %v329 = vadd.f32 %v327, %v328
        %v330 = vrot.slane %v329, 1
        %v331 = vadd.f32 %v329, %v330
        %s332 = vtos %v331
        %v333 = vstv %s332
        %vm334 = vcmask 0
        %335 = vst.msk [vmem:[%s217] sm:$0x1] %vm334, %v333
        %p336 = scmp.lt.s32.totalorder %s17, 1
        %s337 = scalar_select %p336, %s17, 1
        %s338 = scalar_lea.vmem %s3, %s337
        // Predicated region
        $region37: #{tpu_custom_call.1} parent=31 // pred_check
          %p339 = pneg %p113
        $region38: #{tpu_custom_call.1} parent=31 // pred_check_branch
          %341 = sbr.rel (%p339) target = $region40
        $region39: #{tpu_custom_call.1} parent=31 // pred_region
          _
        $region40: #{tpu_custom_call.1} parent=31 // pred_fallthru
          _
      $region32: #{tpu_custom_call.1} parent=5 // pred_fallthru
        _
      %p342 = scmp.le.s32.totalorder 2, %s12
      // Predicated region
      $region41: #{tpu_custom_call.1} parent=5 // pred_check
        %p343 = pneg %p342
      $region42: #{tpu_custom_call.1} parent=5 // pred_check_branch
        %345 = sbr.rel (%p343) target = $region44
      $region43: #{tpu_custom_call.1} parent=5 // pred_region
        %s346 = ssub.s32 %s12, 2
        // Predicated region
        $region45: #{tpu_custom_call.1} parent=43 // pred_check
          %p347 = pneg %p119
        $region46: #{tpu_custom_call.1} parent=43 // pred_check_branch
          %349 = sbr.rel (%p347) target = $region48
        $region47: #{tpu_custom_call.1} parent=43 // pred_region
          %p350 = scmp.lt.s32.totalorder %s18, 1
          %s351 = scalar_select %p350, %s18, 1
          %s352 = scalar_lea.vmem %s3, %s351
        $region48: #{tpu_custom_call.1} parent=43 // pred_fallthru
          _
      $region44: #{tpu_custom_call.1} parent=5 // pred_fallthru
        _
    $region6: #{tpu_custom_call.1} parent=1 // loop_footer
      %s16 = sadd.s32 1, %s12
    $region7: #{tpu_custom_call.1} parent=1 // loop_footer_branch
      %11 = sbr.rel target = $region3
    $region8: #{tpu_custom_call.1} parent=1 // loop_exit
      _
    %353 = vsyncpa [#allocation3], 1
    %s354 = scalar_lea.sflag [#allocation3], 1
    %355 = vsyncpa %s354, 1

</llo_original>
